<compile_context>
chip_gen: v5e
topology: v5e:2x2
jax: 0.10.0
libtpu: 0.0.40
codegen_flags: <defaults>
</compile_context>

<pallas_src>
import jax
import jax.numpy as jnp
from jax.experimental import pallas as pl
from jax.experimental.pallas import tpu as pltpu


def _skip_kernel(x_ref, scale_ref, bias_ref, w_ref, b_ref, o_ref):
    # x_ref:     (1, C_in, TM)   channel-on-sublane, spatial-on-lane activations
    # scale_ref: (C_in, 1)       folded BN scale   (gamma / sqrt(var + eps))
    # bias_ref:  (C_in, 1)       folded BN bias    (beta - mean * scale)
    # w_ref:     (C_out, C_in)   1x1 conv weight
    # b_ref:     (C_out, 1)      conv bias
    # o_ref:     (1, C_out, TM)  lane-dense output
    x = x_ref[0].astype(jnp.float32)                                 # (C_in, TM)
    h = jnp.maximum(x * scale_ref[...] + bias_ref[...], 0.0)        # BN + ReLU (VPU)
    y = jnp.dot(w_ref[...], h, preferred_element_type=jnp.float32)  # MXU (C_out, TM)
    y = y + b_ref[...]                                               # conv bias (VPU)
    o_ref[0] = y.astype(o_ref.dtype)


def skip_layer_forward(x_nchw, params, *, in_ch, out_ch, stride):
    """Pallas implementation of SkipLayer.forward (inference-mode BN).

    x_nchw: (N, C_in, H, W)
    params: dict with bn_gamma, bn_beta, bn_mean, bn_var,
            conv_w (C_out, C_in, 1, 1), conv_b (C_out,)
    """
    if in_ch == out_ch:
        return x_nchw  # identity branch (matches the PyTorch module)

    eps = 1e-5
    scale = (params["bn_gamma"] / jnp.sqrt(params["bn_var"] + eps)).astype(jnp.float32)
    bias = (params["bn_beta"] - params["bn_mean"] * scale).astype(jnp.float32)
    w = params["conv_w"].reshape(out_ch, in_ch).astype(jnp.float32)   # (C_out, C_in)
    b = params["conv_b"].astype(jnp.float32)                          # (C_out,)

    # 1x1 conv with stride s == channel matmul at strided spatial sites.
    # Pointwise BN/ReLU commute with the slice, so slice first (cheapest order:
    # the kernel then only ever touches the surviving sites).
    xs = x_nchw[:, :, ::stride, ::stride] if stride > 1 else x_nchw   # (N, C, Ho, Wo)
    N, C, Ho, Wo = xs.shape
    msp = Ho * Wo
    xf = xs.reshape(N, C, msp)                 # contiguous reshape — NO transpose

    # Spatial tile on the lane axis: multiple of 128, as large as comfortably
    # fits VMEM with double-buffered input + output tiles (keep well under the
    # scoped limit so the pipeline never stalls on allocation).
    LANE = 128
    bytes_per_col = 2 * (in_ch + out_ch) * 4          # double-buffered in + out
    tm_cap = (8 * 1024 * 1024 // max(bytes_per_col, 1)) // LANE * LANE
    tm_cap = max(LANE, min(8192, tm_cap))
    msp_rounded = pl.cdiv(msp, LANE) * LANE
    TM = min(tm_cap, msp_rounded)
    Mp = pl.cdiv(msp, TM) * TM
    if Mp != msp:
        # Pad spatial columns (rare: only non-divisible shapes).  Each output
        # column depends only on its own input column, so padding is harmless
        # and is sliced off below.
        xf = jnp.pad(xf, ((0, 0), (0, 0), (0, Mp - msp)))

    grid = (N, Mp // TM)

    out_f = pl.pallas_call(
        _skip_kernel,
        out_shape=jax.ShapeDtypeStruct((N, out_ch, Mp), x_nchw.dtype),
        grid_spec=pltpu.PrefetchScalarGridSpec(
            num_scalar_prefetch=0,
            grid=grid,
            in_specs=[
                pl.BlockSpec((1, in_ch, TM), lambda n, m: (n, 0, m)),
                # Constant index_map -> fetched once, stays resident in VMEM.
                pl.BlockSpec((in_ch, 1), lambda n, m: (0, 0)),
                pl.BlockSpec((in_ch, 1), lambda n, m: (0, 0)),
                pl.BlockSpec((out_ch, in_ch), lambda n, m: (0, 0)),
                pl.BlockSpec((out_ch, 1), lambda n, m: (0, 0)),
            ],
            out_specs=pl.BlockSpec((1, out_ch, TM), lambda n, m: (n, 0, m)),
        ),
        compiler_params=pltpu.CompilerParams(
            dimension_semantics=("parallel", "parallel"),
            vmem_limit_bytes=32 * 1024 * 1024,
        ),
    )(xf, scale[:, None], bias[:, None], w, b[:, None])

    out = out_f[:, :, :msp].reshape(N, out_ch, Ho, Wo)                # already NCHW
    return out


def _reference(x_nchw, params, *, in_ch, out_ch, stride):
    """Pure-JAX reference for correctness check."""
    if in_ch == out_ch:
        return x_nchw
    eps = 1e-5
    scale = params["bn_gamma"] / jnp.sqrt(params["bn_var"] + eps)
    bias = params["bn_beta"] - params["bn_mean"] * scale
    h = x_nchw * scale[None, :, None, None] + bias[None, :, None, None]
    h = jnp.maximum(h, 0.0)
    h = h[:, :, ::stride, ::stride]
    w = params["conv_w"].reshape(out_ch, in_ch)
    y = jnp.einsum("nchw,oc->nohw", h, w) + params["conv_b"][None, :, None, None]
    return y


if __name__ == "__main__":
    key = jax.random.PRNGKey(0)
    k_x, k_g, k_b, k_m, k_v, k_w, k_cb = jax.random.split(key, 7)

    in_ch, out_ch, stride = 4, 8, 2
    N, H, W = 2, 16, 16

    x = jax.random.normal(k_x, (N, in_ch, H, W), dtype=jnp.float32)

    params = {
        "bn_gamma": jax.random.normal(k_g, (in_ch,), dtype=jnp.float32) * 0.1 + 1.0,
        "bn_beta": jax.random.normal(k_b, (in_ch,), dtype=jnp.float32) * 0.1,
        "bn_mean": jax.random.normal(k_m, (in_ch,), dtype=jnp.float32) * 0.1,
        "bn_var": jnp.abs(jax.random.normal(k_v, (in_ch,), dtype=jnp.float32)) + 0.5,
        "conv_w": jax.random.normal(k_w, (out_ch, in_ch, 1, 1), dtype=jnp.float32)
                  * (1.0 / (in_ch ** 0.5)),
        "conv_b": jax.random.normal(k_cb, (out_ch,), dtype=jnp.float32) * 0.05,
    }

    # Main case: 16x16, stride 2 -> 8x8 (spatial divides the lane tile).
    out = skip_layer_forward(x, params, in_ch=in_ch, out_ch=out_ch, stride=stride)
    out = jax.block_until_ready(out)
    ref = _reference(x, params, in_ch=in_ch, out_ch=out_ch, stride=stride)
    assert out.shape == (N, out_ch, H // stride, W // stride), out.shape
    assert jnp.allclose(out, ref, atol=1e-4, rtol=1e-4), float(jnp.max(jnp.abs(out - ref)))

    # Awkward (non-divisible) spatial shape: 14x14 with stride 2 -> 7x7.
    x2 = jax.random.normal(k_x, (N, in_ch, 14, 14), dtype=jnp.float32)
    out2 = jax.block_until_ready(
        skip_layer_forward(x2, params, in_ch=in_ch, out_ch=out_ch, stride=stride))
    ref2 = _reference(x2, params, in_ch=in_ch, out_ch=out_ch, stride=stride)
    assert out2.shape == (N, out_ch, 7, 7), out2.shape
    assert jnp.allclose(out2, ref2, atol=1e-4, rtol=1e-4), float(jnp.max(jnp.abs(out2 - ref2)))

    # Stride 1 path.
    out3 = jax.block_until_ready(
        skip_layer_forward(x, params, in_ch=in_ch, out_ch=out_ch, stride=1))
    ref3 = _reference(x, params, in_ch=in_ch, out_ch=out_ch, stride=1)
    assert out3.shape == (N, out_ch, H, W), out3.shape
    assert jnp.allclose(out3, ref3, atol=1e-4, rtol=1e-4), float(jnp.max(jnp.abs(out3 - ref3)))

    # Identity branch (in_ch == out_ch) sanity check.
    out_id = skip_layer_forward(x, params, in_ch=in_ch, out_ch=in_ch, stride=stride)
    assert jnp.array_equal(out_id, x)

    print("KERNEL_OK")
</pallas_src>

<mosaic_0001>
module attributes {stable_mosaic.version = 11 : i64} {
  func.func @_skip_kernel(%arg0: i32, %arg1: i32, %arg2: memref<1x4x128xf32, #tpu.memory_space<vmem>>, %arg3: memref<4x1xf32, #tpu.memory_space<vmem>>, %arg4: memref<4x1xf32, #tpu.memory_space<vmem>>, %arg5: memref<8x4xf32, #tpu.memory_space<vmem>>, %arg6: memref<8x1xf32, #tpu.memory_space<vmem>>, %arg7: memref<1x8x128xf32, #tpu.memory_space<vmem>>) attributes {dimension_semantics = [#tpu.dimension_semantics<parallel>, #tpu.dimension_semantics<parallel>], iteration_bounds = array<i64: 2, 1>, scalar_prefetch = 0 : i64, scratch_operands = 0 : i64, tpu.core_type = #tpu.core_type<tc>, window_params = [{transform_indices = @transform_0, window_bounds = array<i64: 1, 4, 128>}, {pipeline_mode = #tpu.pipeline_mode<synchronous>, transform_indices = @transform_1, window_bounds = array<i64: 4, 1>}, {pipeline_mode = #tpu.pipeline_mode<synchronous>, transform_indices = @transform_2, window_bounds = array<i64: 4, 1>}, {pipeline_mode = #tpu.pipeline_mode<synchronous>, transform_indices = @transform_3, window_bounds = array<i64: 8, 4>}, {pipeline_mode = #tpu.pipeline_mode<synchronous>, transform_indices = @transform_4, window_bounds = array<i64: 8, 1>}, {transform_indices = @transform_5, window_bounds = array<i64: 1, 8, 128>}]} {
    %c0 = arith.constant 0 : index
    %c0_0 = arith.constant 0 : index
    %c0_1 = arith.constant 0 : index
    %0 = vector.load %arg2[%c0, %c0_0, %c0_1] : memref<1x4x128xf32, #tpu.memory_space<vmem>>, vector<1x4x128xf32>
    %1 = vector.shape_cast %0 : vector<1x4x128xf32> to vector<4x128xf32>
    %c0_2 = arith.constant 0 : index
    %c0_3 = arith.constant 0 : index
    %2 = vector.load %arg3[%c0_2, %c0_3] : memref<4x1xf32, #tpu.memory_space<vmem>>, vector<4x1xf32>
    %3 = vector.broadcast %2 : vector<4x1xf32> to vector<4x128xf32>
    %4 = arith.mulf %1, %3 : vector<4x128xf32>
    %c0_4 = arith.constant 0 : index
    %c0_5 = arith.constant 0 : index
    %5 = vector.load %arg4[%c0_4, %c0_5] : memref<4x1xf32, #tpu.memory_space<vmem>>, vector<4x1xf32>
    %6 = vector.broadcast %5 : vector<4x1xf32> to vector<4x128xf32>
    %7 = arith.addf %4, %6 : vector<4x128xf32>
    %cst = arith.constant 0.000000e+00 : f32
    %8 = vector.broadcast %cst : f32 to vector<4x128xf32>
    %9 = arith.maximumf %7, %8 : vector<4x128xf32>
    %c0_6 = arith.constant 0 : index
    %c0_7 = arith.constant 0 : index
    %10 = vector.load %arg5[%c0_6, %c0_7] : memref<8x4xf32, #tpu.memory_space<vmem>>, vector<8x4xf32>
    %cst_8 = arith.constant dense<0.000000e+00> : vector<8x128xf32>
    %11 = tpu.matmul %10, %9, %cst_8 {dimension_numbers = #tpu.dot_dimension_numbers<[1], [0], [0], [1], [0, 0, 1, 1], [], []>} : vector<8x4xf32>, vector<4x128xf32>, vector<8x128xf32> -> vector<8x128xf32>
    %c0_9 = arith.constant 0 : index
    %c0_10 = arith.constant 0 : index
    %12 = vector.load %arg6[%c0_9, %c0_10] : memref<8x1xf32, #tpu.memory_space<vmem>>, vector<8x1xf32>
    %13 = vector.broadcast %12 : vector<8x1xf32> to vector<8x128xf32>
    %14 = arith.addf %11, %13 : vector<8x128xf32>
    %c0_11 = arith.constant 0 : index
    %c0_12 = arith.constant 0 : index
    %c0_13 = arith.constant 0 : index
    %15 = vector.load %arg7[%c0_11, %c0_12, %c0_13] : memref<1x8x128xf32, #tpu.memory_space<vmem>>, vector<1x8x128xf32>
    %16 = vector.shape_cast %15 : vector<1x8x128xf32> to vector<8x128xf32>
    %17 = vector.shape_cast %14 : vector<8x128xf32> to vector<1x8x128xf32>
    tpu.vector_store %arg7[%c0_11, %c0_12, %c0_13], %17 {strides = array<i32>} : memref<1x8x128xf32, #tpu.memory_space<vmem>>, vector<1x8x128xf32>,
    return
  }
  func.func @transform_0(%arg0: i32, %arg1: i32) -> (i32, i32, i32) {
    %c0_i32 = arith.constant 0 : i32
    %c0_i32_0 = arith.constant 0 : i32
    return %arg0, %c0_i32, %arg1 : i32, i32, i32
  }
  func.func @transform_1(%arg0: i32, %arg1: i32) -> (i32, i32) {
    %c0_i32 = arith.constant 0 : i32
    %c0_i32_0 = arith.constant 0 : i32
    %c0_i32_1 = arith.constant 0 : i32
    return %c0_i32, %c0_i32_0 : i32, i32
  }
  func.func @transform_2(%arg0: i32, %arg1: i32) -> (i32, i32) {
    %c0_i32 = arith.constant 0 : i32
    %c0_i32_0 = arith.constant 0 : i32
    %c0_i32_1 = arith.constant 0 : i32
    return %c0_i32, %c0_i32_0 : i32, i32
  }
  func.func @transform_3(%arg0: i32, %arg1: i32) -> (i32, i32) {
    %c0_i32 = arith.constant 0 : i32
    %c0_i32_0 = arith.constant 0 : i32
    %c0_i32_1 = arith.constant 0 : i32
    return %c0_i32, %c0_i32_0 : i32, i32
  }
  func.func @transform_4(%arg0: i32, %arg1: i32) -> (i32, i32) {
    %c0_i32 = arith.constant 0 : i32
    %c0_i32_0 = arith.constant 0 : i32
    %c0_i32_1 = arith.constant 0 : i32
    return %c0_i32, %c0_i32_0 : i32, i32
  }
  func.func @transform_5(%arg0: i32, %arg1: i32) -> (i32, i32, i32) {
    %c0_i32 = arith.constant 0 : i32
    %c0_i32_0 = arith.constant 0 : i32
    return %arg0, %c0_i32, %arg1 : i32, i32, i32
  }
}

</mosaic_0001>

<llo_original>
// kernel: tpu_custom_call.1
$region0: #{tpu_custom_call.1}
  #allocation0 [shape = 'u32[]', space=smem, size = 0x4, offset = 0x4, fixed_abs, tag = 'smem constant byte address 0x4 - core index']
  #allocation1 [shape = 'u32[72,128]{1,0:T(1,128)}', space=vmem, size = 0x9000, scoped, tag = 'internal scratch']
  %s0 = inlined_call_operand.vmem [shape: f32[2,4,128], index: 0, kind: input, shape index: {}]
  %s1 = inlined_call_operand.vmem [shape: f32[4,1], index: 1, kind: input, shape index: {}]
  %s2 = inlined_call_operand.vmem [shape: f32[4,1], index: 2, kind: input, shape index: {}]
  %s3 = inlined_call_operand.vmem [shape: f32[8,4], index: 3, kind: input, shape index: {}]
  %s4 = inlined_call_operand.vmem [shape: f32[8,1], index: 4, kind: input, shape index: {}]
  %s5 = inlined_call_operand.hbm [shape: f32[2,8,128], index: 5, kind: output, shape index: {}]
  %s6 = sld [smem:[#allocation0]]
  $region53: #{tpu_custom_call.1} parent=0
    _
  %s8 = ssub.s32 1, %s6
  %s9 = scalar_select 0, %s8, %s6
  $region1: #{tpu_custom_call.1} parent=0
    #allocation2 [shape = 'u8[8192]{0}', space=vmem, size = 0x2000, scoped, tag = 'output window, operand 0']
    #allocation3 [shape = 's32[2]{0}', space=sflag, size = 0x8, scoped, tag = 'scoped memory for tpu_custom_call.1']
    %10 = vsyncpa [#allocation3], 0
    %s11 = scalar_lea.sflag [#allocation3], 1
    %12 = vsyncpa %s11, 0
    loop: start=0, step=1, limit=4
    $region2: #{tpu_custom_call.1} parent=1 // loop_pre_header
      _
    $region3: #{tpu_custom_call.1} parent=1 // loop_header
      %s14 = sphi 0, %s18
      %p15 = scmp.ge.s32.totalorder %s14, 4
      %s21 = sphi 0, %s33
      %s22 = sphi 0, %s29
      %s23 = sphi 0, %s21
      %s24 = sphi 0, %s22
      %s25 = sphi 0, %s23
      %s26 = sphi 0, %s24
      %s38 = sphi 0, %s40
      %s41 = sphi 0, %s38
      %s42 = sphi 0, %s41
      %s58 = sphi 0, %s42
      %s62 = sphi 0, %s62
      %s64 = sphi 0, %s62
      %s65 = sphi 0, %s64
      %s79 = sphi 0, %s65
      %s83 = sphi 0, %s83
      %s85 = sphi 0, %s83
      %s86 = sphi 0, %s85
      %s100 = sphi 0, %s86
      %s104 = sphi 0, %s104
      %s106 = sphi 0, %s104
      %s107 = sphi 0, %s106
      %s121 = sphi 0, %s107
      %s125 = sphi 0, %s125
      %s127 = sphi 0, %s125
      %s128 = sphi 0, %s127
      %s142 = sphi 0, %s128
      %s150 = sphi 0, %s152
      %s153 = sphi 0, %s150
      %s154 = sphi 0, %s153
      %s170 = sphi 0, %s154
    $region4: #{tpu_custom_call.1} parent=1 // loop_header_branch
      %17 = sbr.rel (%p15) target = $region8
    $region5: #{tpu_custom_call.1} parent=1 // loop_body
      %s19 = ssub.s32 %s14, 1
      %s20 = ssub.s32 %s14, 2
      %s27 = sadd.s32 1, %s22
      %p28 = scmp.ge.s32.totalorder %s27, 1
      %s29 = scalar_select %p28, 0, %s27
      %s30 = sadd.s32 1, %s21
      %s31 = scalar_select %p28, %s30, %s21
      %p32 = scmp.ge.s32.totalorder %s31, 2
      %s33 = scalar_select %p32, 0, %s31
      %s34 = ssub.s32 %s21, %s33
      %s35 = ssub.s32 %s22, %s29
      %s36 = sor.u32 %s34, %s35
      %p37 = scmp.eq.s32.totalorder %s36, 0
      %s39 = sadd.s32 %s38, 1
      %s40 = scalar_select %p37, %s38, %s39
      %p43 = pneg %p37
      %p44 = scmp.eq.s32.totalorder %s14, 1
      %p45 = por %p43, %p44
      %p46 = scmp.ne.s32.totalorder %s38, %s41
      %p47 = scmp.eq.s32.totalorder %s14, 0
      %p48 = por %p46, %p47
      %p49 = scmp.ne.s32.totalorder %s38, %s41
      %p50 = scmp.eq.s32.totalorder %s19, 1
      %p51 = por %p49, %p50
      %p52 = scmp.ne.s32.totalorder %s41, %s42
      %p53 = scmp.eq.s32.totalorder %s19, 0
      %p54 = por %p52, %p53
      %p55 = scmp.ne.s32.totalorder %s41, %s42
      %p56 = scmp.eq.s32.totalorder %s20, 1
      %p57 = por %p55, %p56
      %p59 = scmp.ne.s32.totalorder %s42, %s58
      %p60 = scmp.eq.s32.totalorder %s20, 0
      %p61 = por %p59, %p60
      %s63 = sadd.s32 %s62, 1
      %p66 = scmp.eq.s32.totalorder %s14, 1
      %p67 = scmp.ne.s32.totalorder %s62, %s64
      %p68 = scmp.eq.s32.totalorder %s14, 0
      %p69 = por %p67, %p68
      %p70 = scmp.ne.s32.totalorder %s62, %s64
      %p71 = scmp.eq.s32.totalorder %s19, 1
      %p72 = por %p70, %p71
      %p73 = scmp.ne.s32.totalorder %s64, %s65
      %p74 = scmp.eq.s32.totalorder %s19, 0
      %p75 = por %p73, %p74
      %p76 = scmp.ne.s32.totalorder %s64, %s65
      %p77 = scmp.eq.s32.totalorder %s20, 1
      %p78 = por %p76, %p77
      %p80 = scmp.ne.s32.totalorder %s65, %s79
      %p81 = scmp.eq.s32.totalorder %s20, 0
      %p82 = por %p80, %p81
      %s84 = sadd.s32 %s83, 1
      %p87 = scmp.eq.s32.totalorder %s14, 1
      %p88 = scmp.ne.s32.totalorder %s83, %s85
      %p89 = scmp.eq.s32.totalorder %s14, 0
      %p90 = por %p88, %p89
      %p91 = scmp.ne.s32.totalorder %s83, %s85
      %p92 = scmp.eq.s32.totalorder %s19, 1
      %p93 = por %p91, %p92
      %p94 = scmp.ne.s32.totalorder %s85, %s86
      %p95 = scmp.eq.s32.totalorder %s19, 0
      %p96 = por %p94, %p95
      %p97 = scmp.ne.s32.totalorder %s85, %s86
      %p98 = scmp.eq.s32.totalorder %s20, 1
      %p99 = por %p97, %p98
      %p101 = scmp.ne.s32.totalorder %s86, %s100
      %p102 = scmp.eq.s32.totalorder %s20, 0
      %p103 = por %p101, %p102
      %s105 = sadd.s32 %s104, 1
      %p108 = scmp.eq.s32.totalorder %s14, 1
      %p109 = scmp.ne.s32.totalorder %s104, %s106
      %p110 = scmp.eq.s32.totalorder %s14, 0
      %p111 = por %p109, %p110
      %p112 = scmp.ne.s32.totalorder %s104, %s106
      %p113 = scmp.eq.s32.totalorder %s19, 1
      %p114 = por %p112, %p113
      %p115 = scmp.ne.s32.totalorder %s106, %s107
      %p116 = scmp.eq.s32.totalorder %s19, 0
      %p117 = por %p115, %p116
      %p118 = scmp.ne.s32.totalorder %s106, %s107
      %p119 = scmp.eq.s32.totalorder %s20, 1
      %p120 = por %p118, %p119
      %p122 = scmp.ne.s32.totalorder %s107, %s121
      %p123 = scmp.eq.s32.totalorder %s20, 0
      %p124 = por %p122, %p123
      %s126 = sadd.s32 %s125, 1
      %p129 = scmp.eq.s32.totalorder %s14, 1
      %p130 = scmp.ne.s32.totalorder %s125, %s127
      %p131 = scmp.eq.s32.totalorder %s14, 0
      %p132 = por %p130, %p131
      %p133 = scmp.ne.s32.totalorder %s125, %s127
      %p134 = scmp.eq.s32.totalorder %s19, 1
      %p135 = por %p133, %p134
      %p136 = scmp.ne.s32.totalorder %s127, %s128
      %p137 = scmp.eq.s32.totalorder %s19, 0
      %p138 = por %p136, %p137
      %p139 = scmp.ne.s32.totalorder %s127, %s128
      %p140 = scmp.eq.s32.totalorder %s20, 1
      %p141 = por %p139, %p140
      %p143 = scmp.ne.s32.totalorder %s128, %s142
      %p144 = scmp.eq.s32.totalorder %s20, 0
      %p145 = por %p143, %p144
      %s146 = ssub.s32 %s21, %s33
      %s147 = ssub.s32 %s22, %s29
      %s148 = sor.u32 %s146, %s147
      %p149 = scmp.eq.s32.totalorder %s148, 0
      %s151 = sadd.s32 %s150, 1
      %s152 = scalar_select %p149, %s150, %s151
      %p155 = pneg %p149
      %p156 = scmp.eq.s32.totalorder %s14, 1
      %p157 = por %p155, %p156
      %p158 = scmp.ne.s32.totalorder %s150, %s153
      %p159 = scmp.eq.s32.totalorder %s14, 0
      %p160 = por %p158, %p159
      %p161 = scmp.ne.s32.totalorder %s150, %s153
      %p162 = scmp.eq.s32.totalorder %s19, 1
      %p163 = por %p161, %p162
      %p164 = scmp.ne.s32.totalorder %s153, %s154
      %p165 = scmp.eq.s32.totalorder %s19, 0
      %p166 = por %p164, %p165
      %p167 = scmp.ne.s32.totalorder %s153, %s154
      %p168 = scmp.eq.s32.totalorder %s20, 1
      %p169 = por %p167, %p168
      %p171 = scmp.ne.s32.totalorder %s154, %s170
      %p172 = scmp.eq.s32.totalorder %s20, 0
      %p173 = por %p171, %p172
      %p174 = scmp.le.s32.totalorder 1, %s14
      %p175 = scmp.lt.s32.totalorder %s14, 3
      %p176 = pnand %p174, %p175
      %p177 = pneg %p176
      // Predicated region
      $region9: #{tpu_custom_call.1} parent=5 // pred_check
        _
      $region10: #{tpu_custom_call.1} parent=5 // pred_check_branch
        %179 = sbr.rel (%p176) target = $region12
      $region11: #{tpu_custom_call.1} parent=5 // pred_region
        %s180 = ssub.s32 %s14, 1
        // Predicated region
        $region13: #{tpu_custom_call.1} parent=11 // pred_check
          %p181 = pneg %p75
        $region14: #{tpu_custom_call.1} parent=11 // pred_check_branch
          %183 = sbr.rel (%p181) target = $region16
        $region15: #{tpu_custom_call.1} parent=11 // pred_region
          _
        $region16: #{tpu_custom_call.1} parent=11 // pred_fallthru
          _
        // Predicated region
        $region17: #{tpu_custom_call.1} parent=11 // pred_check
          %p184 = pneg %p96
        $region18: #{tpu_custom_call.1} parent=11 // pred_check_branch
          %186 = sbr.rel (%p184) target = $region20
        $region19: #{tpu_custom_call.1} parent=11 // pred_region
          _
        $region20: #{tpu_custom_call.1} parent=11 // pred_fallthru
          _
        // Predicated region
        $region21: #{tpu_custom_call.1} parent=11 // pred_check
          %p187 = pneg %p117
        $region22: #{tpu_custom_call.1} parent=11 // pred_check_branch
          %189 = sbr.rel (%p187) target = $region24
        $region23: #{tpu_custom_call.1} parent=11 // pred_region
          _
        $region24: #{tpu_custom_call.1} parent=11 // pred_fallthru
          _
        // Predicated region
        $region25: #{tpu_custom_call.1} parent=11 // pred_check
          %p190 = pneg %p138
        $region26: #{tpu_custom_call.1} parent=11 // pred_check_branch
          %192 = sbr.rel (%p190) target = $region28
        $region27: #{tpu_custom_call.1} parent=11 // pred_region
          _
        $region28: #{tpu_custom_call.1} parent=11 // pred_fallthru
          _
      $region12: #{tpu_custom_call.1} parent=5 // pred_fallthru
        _
      %p193 = scmp.lt.s32.totalorder %s14, 2
      // Predicated region
      $region29: #{tpu_custom_call.1} parent=5 // pred_check
        %p194 = pneg %p193
      $region30: #{tpu_custom_call.1} parent=5 // pred_check_branch
        %196 = sbr.rel (%p194) target = $region32
      $region31: #{tpu_custom_call.1} parent=5 // pred_region
        // Predicated region
        $region33: #{tpu_custom_call.1} parent=31 // pred_check
          %p197 = pneg %p48
        $region34: #{tpu_custom_call.1} parent=31 // pred_check_branch
          %199 = sbr.rel (%p197) target = $region36
        $region35: #{tpu_custom_call.1} parent=31 // pred_region
          %p200 = scmp.lt.s32.totalorder %s21, 1
          %s201 = scalar_select %p200, %s21, 1
          %p202 = scmp.lt.s32.totalorder %s22, 0
          %s203 = scalar_select %p202, %s22, 0
          %s204 = sadd.s32 %s203, %s201
          %s205 = smul.addr %s204, 4
          %s206 = scalar_lea.vmem %s0, %s205
        $region36: #{tpu_custom_call.1} parent=31 // pred_fallthru
          _
      $region32: #{tpu_custom_call.1} parent=5 // pred_fallthru
        _
      %p207 = scmp.le.s32.totalorder 1, %s14
      %p208 = scmp.lt.s32.totalorder %s14, 3
      %p209 = pnand %p207, %p208
      %p210 = pneg %p209
      // Predicated region
      $region37: #{tpu_custom_call.1} parent=5 // pred_check
        _
      $region38: #{tpu_custom_call.1} parent=5 // pred_check_branch
        %212 = sbr.rel (%p209) target = $region40
      $region39: #{tpu_custom_call.1} parent=5 // pred_region
        %s213 = ssub.s32 %s14, 1
        %p214 = scmp.lt.s32.totalorder %s23, 1
        %s215 = scalar_select %p214, %s23, 1
        %p216 = scmp.lt.s32.totalorder %s24, 0
        %s217 = scalar_select %p216, %s24, 0
        %s218 = sadd.s32 %s217, %s215
        %s219 = smul.addr %s218, 4
        %s220 = scalar_lea.vmem %s0, %s219
        %p221 = pneg %p54
        %p222 = pneg %p51
        %p223 = pneg %p75
        %p224 = pneg %p72
        %p225 = pneg %p96
        %p226 = pneg %p93
        %p227 = pneg %p117
        %p228 = pneg %p114
        %p229 = pneg %p138
        %p230 = pneg %p135
        %p231 = pneg %p166
        %p232 = pneg %p163
        %s233 = sand.u32 %s153, 1
        %s234 = scalar_lea.sflag [#allocation3], %s233
        %s235 = sand.u32 %s153, 1
        %s236 = smul.addr %s235, 8
        %s237 = scalar_lea.vmem [#allocation2], %s236
        %p238 = scmp.lt.s32.totalorder %s23, 1
        %s239 = scalar_select %p238, %s23, 1
        %p240 = scmp.lt.s32.totalorder %s24, 0
        %s241 = scalar_select %p240, %s24, 0
        %s242 = sadd.s32 %s241, %s239
        %s243 = smul.addr %s242, 4
        %s244 = scalar_lea.vmem %s0, %s243
        %v245 = vld [vmem:[%s244] sm:$0xf]
        %v246 = vld [vmem:[%s1] sm:$0xf]
        %248 = vset.pattern.permute.xlu0 0
        %249 = vperm.xlu0 %248, %v246
        %v250 = vpop.permute.xlu0 %249
        %v252 = vmul.f32 %v245, %v250
        %v253 = vld [vmem:[%s2] sm:$0xf]
        %255 = vset.pattern.permute.xlu0 0
        %256 = vperm.xlu0 %255, %v253
        %v257 = vpop.permute.xlu0 %256
        %v259 = vadd.f32 %v252, %v257
        %v260 = vmax.f32 %v259, 0.0
        %v261 = vld [vmem:[%s3] sm:$0xff]
        %v262 = vld [vmem:[%s4] sm:$0xff]
        %264 = vset.pattern.permute.xlu0 0
        %265 = vperm.xlu0 %264, %v262
        %v266 = vpop.permute.xlu0 %265
        %vm268 = vcmask 31744
        %v270 = vsel %vm268, %v261, 0
        %vm272 = vcmask 1043456
        %v274 = vsel %vm272, %v260, 0
        %276 = vmatpush.msra.mxu0 0.0
        %277 = vmatpush.msra.mxu0 0.0
        %278 = vmatpush.msra.mxu0 0.0
        %279 = vmatpush.msra.mxu0 0.0
        %280 = vmatpush.msra.mxu0 0.0
        %281 = vmatpush.msra.mxu0 0.0
        %282 = vmatpush.msra.mxu0 0.0
        %283 = vmatpush.msra.mxu0 0.0
        %284 = vmatpush.msra.mxu0 0.0
        %285 = vmatpush.msra.mxu0 0.0
        %286 = vmatpush.msra.mxu0 0.0
        %287 = vmatpush.msra.mxu0 0.0
        %288 = vmatpush.msra.mxu0 0.0
        %289 = vmatpush.msra.mxu0 0.0
        %290 = vmatpush.msra.mxu0 0.0
        %291 = vmatpush.msra.mxu0 %v274
        %292 = vmatmul.f32.gmra.mxu0 %v270
        %v293 = vpop.f32.mrf.mxu0
        %v294 = vadd.f32 %v266, %v293
        %295 = vdwg.mxu0
        %296 = vst [vmem:[%s237] sm:$0xff] %v294
        %s297 = sand.u32 %s153, 1
        %s298 = scalar_lea.sflag [#allocation3], %s297
        %s299 = sand.u32 %s153, 1
        %s300 = smul.addr %s299, 8
        %s301 = scalar_lea.vmem [#allocation2], %s300
        // Predicated region
        $region41: #{tpu_custom_call.1} parent=39 // pred_check
          %p302 = pneg %p163
        $region42: #{tpu_custom_call.1} parent=39 // pred_check_branch
          %304 = sbr.rel (%p302) target = $region44
        $region43: #{tpu_custom_call.1} parent=39 // pred_region
          %306 = vsyncadd %s298, 0
          %s307 = sadd.s32 %s24, %s23
          %s308 = smul.addr %s307, 8
          %s309 = scalar_lea.hbm %s5, %s308
          %s311 = sshll.u32 %s301, 4
          %s312 = int_to_ptr.vmem [resolvable:$true] %s311
          %s313 = sshll.u32 %s309, 4
          %s314 = int_to_ptr.hbm [resolvable:$true] %s313
          %316 = dma.vmem_to_hbm [thread:$0]  %s312, 128, %s314, %s298
        $region44: #{tpu_custom_call.1} parent=39 // pred_fallthru
          _
      $region40: #{tpu_custom_call.1} parent=5 // pred_fallthru
        _
      %p317 = scmp.le.s32.totalorder 2, %s14
      // Predicated region
      $region45: #{tpu_custom_call.1} parent=5 // pred_check
        %p318 = pneg %p317
      $region46: #{tpu_custom_call.1} parent=5 // pred_check_branch
        %320 = sbr.rel (%p318) target = $region48
      $region47: #{tpu_custom_call.1} parent=5 // pred_region
        %s321 = ssub.s32 %s14, 2
        // Predicated region
        $region49: #{tpu_custom_call.1} parent=47 // pred_check
          %p322 = pneg %p169
        $region50: #{tpu_custom_call.1} parent=47 // pred_check_branch
          %324 = sbr.rel (%p322) target = $region52
        $region51: #{tpu_custom_call.1} parent=47 // pred_region
          %s325 = sand.u32 %s154, 1
          %s326 = scalar_lea.sflag [#allocation3], %s325
          %s327 = sand.u32 %s154, 1
          %s328 = smul.addr %s327, 8
          %s329 = scalar_lea.vmem [#allocation2], %s328
          %331 = dma.done %s326, 128
        $region52: #{tpu_custom_call.1} parent=47 // pred_fallthru
          _
      $region48: #{tpu_custom_call.1} parent=5 // pred_fallthru
        _
    $region6: #{tpu_custom_call.1} parent=1 // loop_footer
      %s18 = sadd.s32 1, %s14
    $region7: #{tpu_custom_call.1} parent=1 // loop_footer_branch
      %13 = sbr.rel target = $region3
    $region8: #{tpu_custom_call.1} parent=1 // loop_exit
      _
    %332 = vsyncpa [#allocation3], 1
    %s333 = scalar_lea.sflag [#allocation3], 1
    %334 = vsyncpa %s333, 1

</llo_original>
